<compile_context>
chip_gen: v7x
topology: tpu7x:2x2x1
jax: 0.10.0
libtpu: 0.0.40
codegen_flags: <defaults>
</compile_context>

<pallas_src>
import functools
import math

import jax
import jax.numpy as jnp
from jax.experimental import pallas as pl
from jax.experimental.pallas import tpu as pltpu


def _softmax_exp_dtype():
    """bf16 exp on v6e/v7x (2x EUP throughput); f32 elsewhere (v5e has no bf16 EUP)."""
    try:
        kind = jax.devices()[0].device_kind.lower()
    except Exception:  # pragma: no cover - defensive
        return jnp.float32
    if "v6" in kind or "v7" in kind:
        return jnp.bfloat16
    return jnp.float32


# --------------------------------------------------------------------------
# Pass 1: h = x @ W (bf16 MXU), f1 = h.a1 (column), f2 = h.a2 (lane-major row)
# --------------------------------------------------------------------------
def _proj_kernel(x_ref, w_ref, a1_ref, a2c_ref, h_ref, f1_ref, f2t_ref):
    # x_ref / w_ref arrive pre-cast to bf16; accumulate in f32 on the MXU.
    h = jnp.dot(x_ref[...], w_ref[...],
                preferred_element_type=jnp.float32)            # (TQ, F_pad) f32
    h_ref[...] = h.astype(jnp.bfloat16)                         # bf16 value stream
    # f1 stays a (TQ, 1) column -- it broadcasts along lanes in pass 2.
    f1_ref[...] = jnp.sum(h * a1_ref[...], axis=-1, keepdims=True)
    # f2 is emitted lane-major: transpose the h tile on the (otherwise idle)
    # XLU and reduce over sublanes, so the store is a lane-dense (1, TQ) row
    # and pass 2 never transposes inside the N^2 hot loop.
    f2t_ref[...] = jnp.sum(h.T * a2c_ref[...], axis=0, keepdims=True)  # (1, TQ)


# --------------------------------------------------------------------------
# Pass 2: masked softmax (online) + att @ h + LayerNorm + ELU epilogue
# --------------------------------------------------------------------------
def _attn_kernel(f1_ref, f2t_ref, adj_ref, hv_ref, g_ref, b_ref, out_ref,
                 m_sc, l_sc, acc_sc, *, alpha, eps, f_out, concat, exp_dtype):
    j = pl.program_id(1)

    @pl.when(j == 0)
    def _init():
        m_sc[...] = jnp.full_like(m_sc, -jnp.inf)
        l_sc[...] = jnp.zeros_like(l_sc)
        acc_sc[...] = jnp.zeros_like(acc_sc)

    neg = jnp.float32(-9e15)
    # e[q, t] = leakyrelu(f1[q] + f2[t])  -- rank-1 broadcast, pure VPU work.
    e = f1_ref[...] + f2t_ref[...]                            # (TQ, TK) f32
    e = jnp.where(e > 0, e, alpha * e)                        # LeakyReLU(alpha)
    # Direct int8 compare: no (TQ, TK) int8->f32 unpack in the hot loop.
    e = jnp.where(adj_ref[...] > 0, e, neg)                   # mask non-edges

    # Online softmax update (flash-attention style).
    m_prev = m_sc[...]
    m_new = jnp.maximum(m_prev, jnp.max(e, axis=1, keepdims=True))
    corr = jnp.exp(m_prev - m_new)                            # (TQ, 1) f32
    # exp in bf16 on v6e/v7x (EUP-bound kernel); the denominator row-sum must
    # still accumulate in f32.
    p = jnp.exp((e - m_new).astype(exp_dtype))                # (TQ, TK)
    l_sc[...] = corr * l_sc[...] + jnp.sum(
        p.astype(jnp.float32), axis=1, keepdims=True)
    acc_sc[...] = corr * acc_sc[...] + jnp.dot(
        p.astype(jnp.bfloat16), hv_ref[...],                  # bf16 x bf16 MXU
        preferred_element_type=jnp.float32)
    m_sc[...] = m_new

    # (attention dropout == identity at inference)

    @pl.when(j == pl.num_programs(1) - 1)
    def _finalize():
        # pl.reciprocal(approx=True): ~2^-12 relative error, a per-row scale
        # that LayerNorm removes exactly (scale-invariant per row).
        hp = acc_sc[...] * pl.reciprocal(l_sc[...], approx=True)
        fpad = hp.shape[-1]
        # LayerNorm over the real F_out columns only (padded columns are 0).
        col = jax.lax.broadcasted_iota(jnp.int32, (1, fpad), 1)
        mask = (col < f_out).astype(jnp.float32)
        inv_f = jnp.float32(1.0 / f_out)
        mean = jnp.sum(hp, axis=-1, keepdims=True) * inv_f
        cen = (hp - mean) * mask
        var = jnp.sum(cen * cen, axis=-1, keepdims=True) * inv_f
        y = cen * jax.lax.rsqrt(var + eps) * g_ref[...] + b_ref[...]
        if concat:
            # ELU; clamp the exp argument so the discarded branch stays finite.
            out_ref[...] = jnp.where(y > 0, y, jnp.exp(jnp.minimum(y, 0.0)) - 1.0)
        else:
            out_ref[...] = y


# --------------------------------------------------------------------------
# Wrapper
# --------------------------------------------------------------------------
def gat_layer(x, adj, W, a, ln_gamma, ln_beta, *, alpha=0.2, eps=1e-5,
              concat=True, tq=512, tk=1024, exp_dtype=None):
    """Pallas GraphAttentionLayer forward (use_sparse=False, eval-mode dropout)."""
    N, f_in = x.shape
    f_out = W.shape[1]
    assert tq % 128 == 0 and tk % 128 == 0, "tq and tk must be multiples of 128"
    if exp_dtype is None:
        exp_dtype = _softmax_exp_dtype()

    f32 = jnp.float32
    bf16 = jnp.bfloat16
    f_pad = max(128, pl.cdiv(f_out, 128) * 128)          # lane-dense feature dim
    n_mult = math.lcm(tq, tk)
    n_pad = pl.cdiv(N, n_mult) * n_mult                  # rows padded to tiles

    # Zero-padded operands: padded rows/columns contribute exactly zero.
    # x / W are pre-cast to bf16 (halves the pass-1 x read, shrinks resident W).
    x_p = jnp.zeros((n_pad, f_in), bf16).at[:N].set(x.astype(bf16))
    w_p = jnp.zeros((f_in, f_pad), bf16).at[:, :f_out].set(W.astype(bf16))
    a1 = jnp.zeros((1, f_pad), f32).at[0, :f_out].set(a[:f_out, 0].astype(f32))
    a2c = jnp.zeros((f_pad, 1), f32).at[:f_out, 0].set(a[f_out:, 0].astype(f32))
    g_p = jnp.zeros((1, f_pad), f32).at[0, :f_out].set(ln_gamma.astype(f32))
    b_p = jnp.zeros((1, f_pad), f32).at[0, :f_out].set(ln_beta.astype(f32))
    # adj must be padded to the tile grid anyway; folding the int8 pack into the
    # same padding pass keeps total HBM traffic lower than re-padding/streaming
    # f32, and the packed form is reusable across heads/layers sharing the graph.
    adj_i8 = jnp.zeros((n_pad, n_pad), jnp.int8).at[:N, :N].set(
        (adj > 0).astype(jnp.int8))

    # ~10 MiB of VMEM at the default tiles; 32 MiB is safe on v5e/v6e/v7x
    # (v7x physical VMEM is 64 MiB).  v6e can raise this to 64-96 MiB together
    # with tq=1024 / tk=2048.
    vmem_limit = 32 * 1024 * 1024

    # ---- pass 1: projection ------------------------------------------------
    h, f1, f2t = pl.pallas_call(
        _proj_kernel,
        grid=(n_pad // tq,),
        in_specs=[
            pl.BlockSpec((tq, f_in), lambda i: (i, 0)),      # x row tile (bf16)
            pl.BlockSpec((f_in, f_pad), lambda i: (0, 0)),   # W (resident, bf16)
            pl.BlockSpec((1, f_pad), lambda i: (0, 0)),      # a1 (row)
            pl.BlockSpec((f_pad, 1), lambda i: (0, 0)),      # a2 (column)
        ],
        out_specs=[
            pl.BlockSpec((tq, f_pad), lambda i: (i, 0)),     # h (bf16)
            pl.BlockSpec((tq, 1), lambda i: (i, 0)),         # f1 column
            pl.BlockSpec((1, tq), lambda i: (0, i)),         # f2 lane-major row
        ],
        out_shape=[
            jax.ShapeDtypeStruct((n_pad, f_pad), bf16),
            jax.ShapeDtypeStruct((n_pad, 1), f32),
            jax.ShapeDtypeStruct((1, n_pad), f32),
        ],
        compiler_params=pltpu.CompilerParams(
            dimension_semantics=("parallel",),
            vmem_limit_bytes=vmem_limit),
        cost_estimate=pl.CostEstimate(
            flops=2 * n_pad * f_in * f_pad + 4 * n_pad * f_pad,
            transcendentals=0,
            bytes_accessed=(n_pad * f_in + f_in * f_pad) * 2
                           + n_pad * f_pad * 2 + n_pad * 8),
    )(x_p, w_p, a1, a2c)

    # ---- pass 2: attention + aggregation + LayerNorm + ELU ------------------
    kernel = functools.partial(_attn_kernel, alpha=float(alpha),
                               eps=float(eps), f_out=int(f_out),
                               concat=bool(concat), exp_dtype=exp_dtype)
    out = pl.pallas_call(
        kernel,
        grid=(n_pad // tq, n_pad // tk),
        in_specs=[
            pl.BlockSpec((tq, 1), lambda i, j: (i, 0)),       # f1 (row-resident)
            pl.BlockSpec((1, tk), lambda i, j: (0, j)),       # f2 (lane-major)
            pl.BlockSpec((tq, tk), lambda i, j: (i, j)),      # adj (int8)
            pl.BlockSpec((tk, f_pad), lambda i, j: (j, 0)),   # h values (bf16)
            pl.BlockSpec((1, f_pad), lambda i, j: (0, 0)),    # LN gamma
            pl.BlockSpec((1, f_pad), lambda i, j: (0, 0)),    # LN beta
        ],
        out_specs=pl.BlockSpec((tq, f_pad), lambda i, j: (i, 0)),
        out_shape=jax.ShapeDtypeStruct((n_pad, f_pad), f32),
        scratch_shapes=[
            pltpu.VMEM((tq, 1), f32),        # running max
            pltpu.VMEM((tq, 1), f32),        # running sum
            pltpu.VMEM((tq, f_pad), f32),    # output accumulator
        ],
        compiler_params=pltpu.CompilerParams(
            dimension_semantics=("parallel", "arbitrary"),
            vmem_limit_bytes=vmem_limit),
        cost_estimate=pl.CostEstimate(
            flops=2 * n_pad * n_pad * f_pad + 8 * n_pad * n_pad,
            transcendentals=n_pad * n_pad + n_pad * f_pad,
            bytes_accessed=n_pad * n_pad
                           + (n_pad // tq) * n_pad * (f_pad * 2 + 4)
                           + n_pad * f_pad * 4),
    )(f1, f2t, adj_i8, h, g_p, b_p)

    return out[:N, :f_out]


def _xavier_uniform(key, shape, gain):
    fan_in, fan_out = shape[0], shape[1]
    bound = gain * jnp.sqrt(6.0 / (fan_in + fan_out))
    return jax.random.uniform(key, shape, jnp.float32, -bound, bound)


if __name__ == "__main__":
    # Small deterministic example: N nodes, in_features -> out_features.
    N, in_features, out_features = 300, 48, 32
    alpha = 0.2

    key = jax.random.PRNGKey(0)
    k_x, k_w, k_a, k_adj = jax.random.split(key, 4)

    x = jax.random.normal(k_x, (N, in_features), jnp.float32)
    W = _xavier_uniform(k_w, (in_features, out_features), gain=1.414)
    a = _xavier_uniform(k_a, (2 * out_features, 1), gain=1.414)
    ln_gamma = jnp.ones((out_features,), jnp.float32)   # nn.LayerNorm defaults
    ln_beta = jnp.zeros((out_features,), jnp.float32)

    # Random binary adjacency with self-loops so softmax rows are well-defined.
    adj = (jax.random.uniform(k_adj, (N, N)) > 0.5).astype(jnp.float32)
    adj = jnp.maximum(adj, jnp.eye(N, dtype=jnp.float32))

    # Small tiles so the 300-node example exercises padding, a 3x3 grid and the
    # multi-step online softmax.  Production defaults are tq=512, tk=1024.
    out = gat_layer(x, adj, W, a, ln_gamma, ln_beta, alpha=alpha,
                    tq=128, tk=128)
    jax.block_until_ready(out)

    exp_dtype = _softmax_exp_dtype()
    a1r = a[:out_features, 0][None, :]
    a2r = a[out_features:, 0][None, :]

    # (1) Tight check: pure-JAX reference mirroring the kernel's mixed precision
    #     (bf16 MXU operands, exp in exp_dtype, f32 accumulation / softmax / LN).
    hb = jnp.dot(x.astype(jnp.bfloat16), W.astype(jnp.bfloat16),
                 preferred_element_type=jnp.float32)
    f1r = jnp.sum(hb * a1r, axis=-1, keepdims=True)
    f2r = jnp.sum(hb * a2r, axis=-1, keepdims=True)
    er = f1r + f2r.T
    er = jnp.where(er > 0, er, alpha * er)
    logits = jnp.where(adj > 0, er, -9e15)
    mr = jnp.max(logits, axis=1, keepdims=True)
    pr = jnp.exp((logits - mr).astype(exp_dtype)).astype(jnp.float32)
    lr = jnp.sum(pr, axis=1, keepdims=True)
    hpr = jnp.dot(pr.astype(jnp.bfloat16), hb.astype(jnp.bfloat16),
                  preferred_element_type=jnp.float32) / lr
    mur = hpr.mean(-1, keepdims=True)
    varr = ((hpr - mur) ** 2).mean(-1, keepdims=True)
    yr = (hpr - mur) * jax.lax.rsqrt(varr + 1e-5) * ln_gamma + ln_beta
    ref_mixed = jnp.where(yr > 0, yr, jnp.exp(jnp.minimum(yr, 0.0)) - 1.0)

    # (2) Semantic check: full-f32 reference equal to the PyTorch module (eval
    #     mode); differences come only from the documented mixed precision.
    h = x @ W
    e = h @ a[:out_features] + (h @ a[out_features:]).T
    e = jnp.where(e > 0, e, alpha * e)
    att = jax.nn.softmax(jnp.where(adj > 0, e, -9e15), axis=1)
    hp = att @ h
    mu = hp.mean(-1, keepdims=True)
    var = ((hp - mu) ** 2).mean(-1, keepdims=True)
    hp = (hp - mu) / jnp.sqrt(var + 1e-5) * ln_gamma + ln_beta
    ref_f32 = jnp.where(hp > 0, hp, jnp.exp(hp) - 1.0)

    bf16_exp = exp_dtype is jnp.bfloat16
    # bf16 exp quantizes the softmax arguments; the online (tiled) max-shift
    # rounds slightly differently from the single-pass reference, so the tight
    # tolerance is wider on v6e/v7x.
    tight = 3e-2 if bf16_exp else 5e-3
    loose_atol = 1e-1 if bf16_exp else 5e-2
    loose_rtol = 1e-1 if bf16_exp else 5e-2

    err_mixed = float(jnp.max(jnp.abs(out - ref_mixed)))
    err_f32 = float(jnp.max(jnp.abs(out - ref_f32)))
    assert jnp.allclose(out, ref_mixed, atol=tight, rtol=tight), (
        f"mixed-precision-matched reference mismatch: max abs err {err_mixed}")
    assert jnp.allclose(out, ref_f32, atol=loose_atol, rtol=loose_rtol), (
        f"f32 reference mismatch (beyond expected bf16 error): {err_f32}")
    print("KERNEL_OK")
</pallas_src>

<mosaic_0001>
module attributes {stable_mosaic.version = 11 : i64} {
  func.func @_proj_kernel(%arg0: i32, %arg1: memref<128x48xbf16, #tpu.memory_space<vmem>>, %arg2: memref<48x128xbf16, #tpu.memory_space<vmem>>, %arg3: memref<1x128xf32, #tpu.memory_space<vmem>>, %arg4: memref<128x1xf32, #tpu.memory_space<vmem>>, %arg5: memref<128x128xbf16, #tpu.memory_space<vmem>>, %arg6: memref<128x1xf32, #tpu.memory_space<vmem>>, %arg7: memref<1x128xf32, #tpu.memory_space<vmem>>) attributes {dimension_semantics = [#tpu.dimension_semantics<parallel>], iteration_bounds = array<i64: 3>, scalar_prefetch = 0 : i64, scratch_operands = 0 : i64, tpu.core_type = #tpu.core_type<tc>, window_params = [{transform_indices = @transform_0, window_bounds = array<i64: 128, 48>}, {pipeline_mode = #tpu.pipeline_mode<synchronous>, transform_indices = @transform_1, window_bounds = array<i64: 48, 128>}, {pipeline_mode = #tpu.pipeline_mode<synchronous>, transform_indices = @transform_2, window_bounds = array<i64: 1, 128>}, {pipeline_mode = #tpu.pipeline_mode<synchronous>, transform_indices = @transform_3, window_bounds = array<i64: 128, 1>}, {transform_indices = @transform_4, window_bounds = array<i64: 128, 128>}, {transform_indices = @transform_5, window_bounds = array<i64: 128, 1>}, {transform_indices = @transform_6, window_bounds = array<i64: 1, 128>}]} {
    %c0 = arith.constant 0 : index
    %c0_0 = arith.constant 0 : index
    %0 = vector.load %arg1[%c0, %c0_0] : memref<128x48xbf16, #tpu.memory_space<vmem>>, vector<128x48xbf16>
    %c0_1 = arith.constant 0 : index
    %c0_2 = arith.constant 0 : index
    %1 = vector.load %arg2[%c0_1, %c0_2] : memref<48x128xbf16, #tpu.memory_space<vmem>>, vector<48x128xbf16>
    %cst = arith.constant dense<0.000000e+00> : vector<128x128xf32>
    %2 = tpu.matmul %0, %1, %cst {dimension_numbers = #tpu.dot_dimension_numbers<[1], [0], [0], [1], [0, 0, 1, 1], [], []>} : vector<128x48xbf16>, vector<48x128xbf16>, vector<128x128xf32> -> vector<128x128xf32>
    %3 = arith.truncf %2 : vector<128x128xf32> to vector<128x128xbf16>
    %c0_3 = arith.constant 0 : index
    %c0_4 = arith.constant 0 : index
    %4 = vector.load %arg5[%c0_3, %c0_4] : memref<128x128xbf16, #tpu.memory_space<vmem>>, vector<128x128xbf16>
    tpu.vector_store %arg5[%c0_3, %c0_4], %3 {strides = array<i32>} : memref<128x128xbf16, #tpu.memory_space<vmem>>, vector<128x128xbf16>,
    %c0_5 = arith.constant 0 : index
    %c0_6 = arith.constant 0 : index
    %5 = vector.load %arg3[%c0_5, %c0_6] : memref<1x128xf32, #tpu.memory_space<vmem>>, vector<1x128xf32>
    %6 = vector.broadcast %5 : vector<1x128xf32> to vector<128x128xf32>
    %7 = arith.mulf %2, %6 : vector<128x128xf32>
    %cst_7 = arith.constant dense<0.000000e+00> : vector<128xf32>
    %8 = vector.multi_reduction <add>, %7, %cst_7 [1] : vector<128x128xf32> to vector<128xf32>
    %9 = vector.shape_cast %8 : vector<128xf32> to vector<128x1xf32>
    %c0_8 = arith.constant 0 : index
    %c0_9 = arith.constant 0 : index
    %10 = vector.load %arg6[%c0_8, %c0_9] : memref<128x1xf32, #tpu.memory_space<vmem>>, vector<128x1xf32>
    tpu.vector_store %arg6[%c0_8, %c0_9], %9 {strides = array<i32>} : memref<128x1xf32, #tpu.memory_space<vmem>>, vector<128x1xf32>,
    %11 = tpu.transpose %2, [1, 0] : vector<128x128xf32> -> vector<128x128xf32>
    %c0_10 = arith.constant 0 : index
    %c0_11 = arith.constant 0 : index
    %12 = vector.load %arg4[%c0_10, %c0_11] : memref<128x1xf32, #tpu.memory_space<vmem>>, vector<128x1xf32>
    %13 = vector.broadcast %12 : vector<128x1xf32> to vector<128x128xf32>
    %14 = arith.mulf %11, %13 : vector<128x128xf32>
    %cst_12 = arith.constant dense<0.000000e+00> : vector<128xf32>
    %15 = vector.multi_reduction <add>, %14, %cst_12 [0] : vector<128x128xf32> to vector<128xf32>
    %16 = vector.shape_cast %15 : vector<128xf32> to vector<1x128xf32>
    %c0_13 = arith.constant 0 : index
    %c0_14 = arith.constant 0 : index
    %17 = vector.load %arg7[%c0_13, %c0_14] : memref<1x128xf32, #tpu.memory_space<vmem>>, vector<1x128xf32>
    tpu.vector_store %arg7[%c0_13, %c0_14], %16 {strides = array<i32>} : memref<1x128xf32, #tpu.memory_space<vmem>>, vector<1x128xf32>,
    return
  }
  func.func @transform_0(%arg0: i32) -> (i32, i32) {
    %c0_i32 = arith.constant 0 : i32
    %c0_i32_0 = arith.constant 0 : i32
    return %arg0, %c0_i32 : i32, i32
  }
  func.func @transform_1(%arg0: i32) -> (i32, i32) {
    %c0_i32 = arith.constant 0 : i32
    %c0_i32_0 = arith.constant 0 : i32
    %c0_i32_1 = arith.constant 0 : i32
    return %c0_i32, %c0_i32_0 : i32, i32
  }
  func.func @transform_2(%arg0: i32) -> (i32, i32) {
    %c0_i32 = arith.constant 0 : i32
    %c0_i32_0 = arith.constant 0 : i32
    %c0_i32_1 = arith.constant 0 : i32
    return %c0_i32, %c0_i32_0 : i32, i32
  }
  func.func @transform_3(%arg0: i32) -> (i32, i32) {
    %c0_i32 = arith.constant 0 : i32
    %c0_i32_0 = arith.constant 0 : i32
    %c0_i32_1 = arith.constant 0 : i32
    return %c0_i32, %c0_i32_0 : i32, i32
  }
  func.func @transform_4(%arg0: i32) -> (i32, i32) {
    %c0_i32 = arith.constant 0 : i32
    %c0_i32_0 = arith.constant 0 : i32
    return %arg0, %c0_i32 : i32, i32
  }
  func.func @transform_5(%arg0: i32) -> (i32, i32) {
    %c0_i32 = arith.constant 0 : i32
    %c0_i32_0 = arith.constant 0 : i32
    return %arg0, %c0_i32 : i32, i32
  }
  func.func @transform_6(%arg0: i32) -> (i32, i32) {
    %c0_i32 = arith.constant 0 : i32
    %c0_i32_0 = arith.constant 0 : i32
    return %c0_i32, %arg0 : i32, i32
  }
}

</mosaic_0001>

<llo_original>
// kernel: tpu_custom_call.1
$region0: #{tpu_custom_call.1}
  #allocation0 [shape = 'u32[]', space=smem, size = 0x4, offset = 0x4, fixed_abs, tag = 'smem constant byte address 0x4 - core index']
  #allocation1 [shape = 'u32[144,128]{1,0:T(1,128)}', space=vmem, size = 0x12000, scoped, tag = 'internal scratch']
  %s0 = inlined_call_operand.vmem [shape: bf16[384,48], index: 0, kind: input, shape index: {}]
  %s1 = inlined_call_operand.vmem [shape: bf16[48,128], index: 1, kind: input, shape index: {}]
  %s2 = inlined_call_operand.vmem [shape: f32[1,128], index: 2, kind: input, shape index: {}]
  %s3 = inlined_call_operand.vmem [shape: f32[128,1], index: 3, kind: input, shape index: {}]
  %s4 = inlined_call_operand.hbm [shape: bf16[384,128], index: 4, kind: output, shape index: {0}]
  %s5 = inlined_call_operand.vmem [shape: f32[384,1], index: 5, kind: output, shape index: {1}]
  %s6 = inlined_call_operand.hbm [shape: f32[1,384], index: 6, kind: output, shape index: {2}]
  %7 = xla_tuple %s4, %s5, %s6
  %s8 = sld [smem:[#allocation0]]
  $region65: #{tpu_custom_call.1} parent=0
    _
  %s10 = ssub.s32 1, %s8
  %s11 = scalar_select 0, %s10, %s8
  $region1: #{tpu_custom_call.1} parent=0
    #allocation2 [shape = 'u8[65536]{0}', space=vmem, size = 0x10000, scoped, tag = 'output window, operand 0']
    #allocation3 [shape = 's32[2]{0}', space=sflag, size = 0x8, scoped, tag = 'scoped memory for tpu_custom_call.1']
    #allocation4 [shape = 'u8[1024]{0}', space=vmem, size = 0x400, scoped, tag = 'output window, operand 2']
    #allocation5 [shape = 's32[2]{0}', space=sflag, size = 0x8, scoped, tag = 'scoped memory for tpu_custom_call.1']
    %12 = vsyncpa [#allocation3], 0
    %s13 = scalar_lea.sflag [#allocation3], 1
    %14 = vsyncpa %s13, 0
    %15 = vsyncpa [#allocation5], 0
    %s16 = scalar_lea.sflag [#allocation5], 1
    %17 = vsyncpa %s16, 0
    loop: start=0, step=1, limit=5
    $region2: #{tpu_custom_call.1} parent=1 // loop_pre_header
      _
    $region3: #{tpu_custom_call.1} parent=1 // loop_header
      %s19 = sphi 0, %s23
      %p20 = scmp.ge.s32.totalorder %s19, 5
      %s29 = sphi 0, %s31
      %s32 = sphi 0, %s29
      %s33 = sphi 0, %s32
      %s49 = sphi 0, %s33
      %s53 = sphi 0, %s53
      %s55 = sphi 0, %s53
      %s56 = sphi 0, %s55
      %s70 = sphi 0, %s56
      %s74 = sphi 0, %s74
      %s76 = sphi 0, %s74
      %s77 = sphi 0, %s76
      %s91 = sphi 0, %s77
      %s95 = sphi 0, %s95
      %s97 = sphi 0, %s95
      %s98 = sphi 0, %s97
      %s112 = sphi 0, %s98
      %s118 = sphi 0, %s120
      %s121 = sphi 0, %s118
      %s122 = sphi 0, %s121
      %s138 = sphi 0, %s122
      %s144 = sphi 0, %s146
      %s147 = sphi 0, %s144
      %s148 = sphi 0, %s147
      %s164 = sphi 0, %s148
      %s170 = sphi 0, %s172
      %s173 = sphi 0, %s170
      %s174 = sphi 0, %s173
      %s190 = sphi 0, %s174
    $region4: #{tpu_custom_call.1} parent=1 // loop_header_branch
      %22 = sbr.rel (%p20) target = $region8
    $region5: #{tpu_custom_call.1} parent=1 // loop_body
      %s24 = ssub.s32 %s19, 1
      %s25 = ssub.s32 %s19, 2
      %s26 = sadd.s32 %s19, 1
      %s27 = ssub.s32 %s19, %s26
      %p28 = scmp.eq.s32.totalorder %s27, 0
      %s30 = sadd.s32 %s29, 1
      %s31 = scalar_select %p28, %s29, %s30
      %p34 = pneg %p28
      %p35 = scmp.eq.s32.totalorder %s19, 2
      %p36 = por %p34, %p35
      %p37 = scmp.ne.s32.totalorder %s29, %s32
      %p38 = scmp.eq.s32.totalorder %s19, 0
      %p39 = por %p37, %p38
      %p40 = scmp.ne.s32.totalorder %s29, %s32
      %p41 = scmp.eq.s32.totalorder %s24, 2
      %p42 = por %p40, %p41
      %p43 = scmp.ne.s32.totalorder %s32, %s33
      %p44 = scmp.eq.s32.totalorder %s24, 0
      %p45 = por %p43, %p44
      %p46 = scmp.ne.s32.totalorder %s32, %s33
      %p47 = scmp.eq.s32.totalorder %s25, 2
      %p48 = por %p46, %p47
      %p50 = scmp.ne.s32.totalorder %s33, %s49
      %p51 = scmp.eq.s32.totalorder %s25, 0
      %p52 = por %p50, %p51
      %s54 = sadd.s32 %s53, 1
      %p57 = scmp.eq.s32.totalorder %s19, 2
      %p58 = scmp.ne.s32.totalorder %s53, %s55
      %p59 = scmp.eq.s32.totalorder %s19, 0
      %p60 = por %p58, %p59
      %p61 = scmp.ne.s32.totalorder %s53, %s55
      %p62 = scmp.eq.s32.totalorder %s24, 2
      %p63 = por %p61, %p62
      %p64 = scmp.ne.s32.totalorder %s55, %s56
      %p65 = scmp.eq.s32.totalorder %s24, 0
      %p66 = por %p64, %p65
      %p67 = scmp.ne.s32.totalorder %s55, %s56
      %p68 = scmp.eq.s32.totalorder %s25, 2
      %p69 = por %p67, %p68
      %p71 = scmp.ne.s32.totalorder %s56, %s70
      %p72 = scmp.eq.s32.totalorder %s25, 0
      %p73 = por %p71, %p72
      %s75 = sadd.s32 %s74, 1
      %p78 = scmp.eq.s32.totalorder %s19, 2
      %p79 = scmp.ne.s32.totalorder %s74, %s76
      %p80 = scmp.eq.s32.totalorder %s19, 0
      %p81 = por %p79, %p80
      %p82 = scmp.ne.s32.totalorder %s74, %s76
      %p83 = scmp.eq.s32.totalorder %s24, 2
      %p84 = por %p82, %p83
      %p85 = scmp.ne.s32.totalorder %s76, %s77
      %p86 = scmp.eq.s32.totalorder %s24, 0
      %p87 = por %p85, %p86
      %p88 = scmp.ne.s32.totalorder %s76, %s77
      %p89 = scmp.eq.s32.totalorder %s25, 2
      %p90 = por %p88, %p89
      %p92 = scmp.ne.s32.totalorder %s77, %s91
      %p93 = scmp.eq.s32.totalorder %s25, 0
      %p94 = por %p92, %p93
      %s96 = sadd.s32 %s95, 1
      %p99 = scmp.eq.s32.totalorder %s19, 2
      %p100 = scmp.ne.s32.totalorder %s95, %s97
      %p101 = scmp.eq.s32.totalorder %s19, 0
      %p102 = por %p100, %p101
      %p103 = scmp.ne.s32.totalorder %s95, %s97
      %p104 = scmp.eq.s32.totalorder %s24, 2
      %p105 = por %p103, %p104
      %p106 = scmp.ne.s32.totalorder %s97, %s98
      %p107 = scmp.eq.s32.totalorder %s24, 0
      %p108 = por %p106, %p107
      %p109 = scmp.ne.s32.totalorder %s97, %s98
      %p110 = scmp.eq.s32.totalorder %s25, 2
      %p111 = por %p109, %p110
      %p113 = scmp.ne.s32.totalorder %s98, %s112
      %p114 = scmp.eq.s32.totalorder %s25, 0
      %p115 = por %p113, %p114
      %s116 = ssub.s32 %s19, %s26
      %p117 = scmp.eq.s32.totalorder %s116, 0
      %s119 = sadd.s32 %s118, 1
      %s120 = scalar_select %p117, %s118, %s119
      %p123 = pneg %p117
      %p124 = scmp.eq.s32.totalorder %s19, 2
      %p125 = por %p123, %p124
      %p126 = scmp.ne.s32.totalorder %s118, %s121
      %p127 = scmp.eq.s32.totalorder %s19, 0
      %p128 = por %p126, %p127
      %p129 = scmp.ne.s32.totalorder %s118, %s121
      %p130 = scmp.eq.s32.totalorder %s24, 2
      %p131 = por %p129, %p130
      %p132 = scmp.ne.s32.totalorder %s121, %s122
      %p133 = scmp.eq.s32.totalorder %s24, 0
      %p134 = por %p132, %p133
      %p135 = scmp.ne.s32.totalorder %s121, %s122
      %p136 = scmp.eq.s32.totalorder %s25, 2
      %p137 = por %p135, %p136
      %p139 = scmp.ne.s32.totalorder %s122, %s138
      %p140 = scmp.eq.s32.totalorder %s25, 0
      %p141 = por %p139, %p140
      %s142 = ssub.s32 %s19, %s26
      %p143 = scmp.eq.s32.totalorder %s142, 0
      %s145 = sadd.s32 %s144, 1
      %s146 = scalar_select %p143, %s144, %s145
      %p149 = pneg %p143
      %p150 = scmp.eq.s32.totalorder %s19, 2
      %p151 = por %p149, %p150
      %p152 = scmp.ne.s32.totalorder %s144, %s147
      %p153 = scmp.eq.s32.totalorder %s19, 0
      %p154 = por %p152, %p153
      %p155 = scmp.ne.s32.totalorder %s144, %s147
      %p156 = scmp.eq.s32.totalorder %s24, 2
      %p157 = por %p155, %p156
      %p158 = scmp.ne.s32.totalorder %s147, %s148
      %p159 = scmp.eq.s32.totalorder %s24, 0
      %p160 = por %p158, %p159
      %p161 = scmp.ne.s32.totalorder %s147, %s148
      %p162 = scmp.eq.s32.totalorder %s25, 2
      %p163 = por %p161, %p162
      %p165 = scmp.ne.s32.totalorder %s148, %s164
      %p166 = scmp.eq.s32.totalorder %s25, 0
      %p167 = por %p165, %p166
      %s168 = ssub.s32 %s19, %s26
      %p169 = scmp.eq.s32.totalorder %s168, 0
      %s171 = sadd.s32 %s170, 1
      %s172 = scalar_select %p169, %s170, %s171
      %p175 = pneg %p169
      %p176 = scmp.eq.s32.totalorder %s19, 2
      %p177 = por %p175, %p176
      %p178 = scmp.ne.s32.totalorder %s170, %s173
      %p179 = scmp.eq.s32.totalorder %s19, 0
      %p180 = por %p178, %p179
      %p181 = scmp.ne.s32.totalorder %s170, %s173
      %p182 = scmp.eq.s32.totalorder %s24, 2
      %p183 = por %p181, %p182
      %p184 = scmp.ne.s32.totalorder %s173, %s174
      %p185 = scmp.eq.s32.totalorder %s24, 0
      %p186 = por %p184, %p185
      %p187 = scmp.ne.s32.totalorder %s173, %s174
      %p188 = scmp.eq.s32.totalorder %s25, 2
      %p189 = por %p187, %p188
      %p191 = scmp.ne.s32.totalorder %s174, %s190
      %p192 = scmp.eq.s32.totalorder %s25, 0
      %p193 = por %p191, %p192
      %p194 = scmp.le.s32.totalorder 1, %s19
      %p195 = scmp.lt.s32.totalorder %s19, 4
      %p196 = pnand %p194, %p195
      %p197 = pneg %p196
      // Predicated region
      $region9: #{tpu_custom_call.1} parent=5 // pred_check
        _
      $region10: #{tpu_custom_call.1} parent=5 // pred_check_branch
        %199 = sbr.rel (%p196) target = $region12
      $region11: #{tpu_custom_call.1} parent=5 // pred_region
        %s200 = ssub.s32 %s19, 1
        // Predicated region
        $region13: #{tpu_custom_call.1} parent=11 // pred_check
          %p201 = pneg %p66
        $region14: #{tpu_custom_call.1} parent=11 // pred_check_branch
          %203 = sbr.rel (%p201) target = $region16
        $region15: #{tpu_custom_call.1} parent=11 // pred_region
          _
        $region16: #{tpu_custom_call.1} parent=11 // pred_fallthru
          _
        // Predicated region
        $region17: #{tpu_custom_call.1} parent=11 // pred_check
          %p204 = pneg %p87
        $region18: #{tpu_custom_call.1} parent=11 // pred_check_branch
          %206 = sbr.rel (%p204) target = $region20
        $region19: #{tpu_custom_call.1} parent=11 // pred_region
          _
        $region20: #{tpu_custom_call.1} parent=11 // pred_fallthru
          _
        // Predicated region
        $region21: #{tpu_custom_call.1} parent=11 // pred_check
          %p207 = pneg %p108
        $region22: #{tpu_custom_call.1} parent=11 // pred_check_branch
          %209 = sbr.rel (%p207) target = $region24
        $region23: #{tpu_custom_call.1} parent=11 // pred_region
          _
        $region24: #{tpu_custom_call.1} parent=11 // pred_fallthru
          _
      $region12: #{tpu_custom_call.1} parent=5 // pred_fallthru
        _
      %p210 = scmp.lt.s32.totalorder %s19, 3
      // Predicated region
      $region25: #{tpu_custom_call.1} parent=5 // pred_check
        %p211 = pneg %p210
      $region26: #{tpu_custom_call.1} parent=5 // pred_check_branch
        %213 = sbr.rel (%p211) target = $region28
      $region27: #{tpu_custom_call.1} parent=5 // pred_region
        // Predicated region
        $region29: #{tpu_custom_call.1} parent=27 // pred_check
          %p214 = pneg %p39
        $region30: #{tpu_custom_call.1} parent=27 // pred_check_branch
          %216 = sbr.rel (%p214) target = $region32
        $region31: #{tpu_custom_call.1} parent=27 // pred_region
          %s217 = smul.u32 16, %s19
          %p218 = scmp.lt.s32.totalorder %s217, 47
          %s219 = scalar_select %p218, %s217, 47
          %s220 = smul.addr %s219, 4
          %s221 = scalar_lea.vmem %s0, %s220
          %s222 = smul.u32 16, %s19
        $region32: #{tpu_custom_call.1} parent=27 // pred_fallthru
          _
      $region28: #{tpu_custom_call.1} parent=5 // pred_fallthru
        _
      %p223 = scmp.le.s32.totalorder 1, %s19
      %p224 = scmp.lt.s32.totalorder %s19, 4
      %p225 = pnand %p223, %p224
      %p226 = pneg %p225
      // Predicated region
      $region33: #{tpu_custom_call.1} parent=5 // pred_check
        _
      $region34: #{tpu_custom_call.1} parent=5 // pred_check_branch
        %228 = sbr.rel (%p225) target = $region36
      $region35: #{tpu_custom_call.1} parent=5 // pred_region
        %s229 = ssub.s32 %s19, 1
        %s230 = smul.u32 16, %s24
        %p231 = scmp.lt.s32.totalorder %s230, 47
        %s232 = scalar_select %p231, %s230, 47
        %s233 = smul.addr %s232, 4
        %s234 = scalar_lea.vmem %s0, %s233
        %p235 = pneg %p45
        %p236 = pneg %p42
        %p237 = pneg %p66
        %p238 = pneg %p63
        %p239 = pneg %p87
        %p240 = pneg %p84
        %p241 = pneg %p108
        %p242 = pneg %p105
        %p243 = pneg %p134
        %p244 = pneg %p131
        %s245 = sand.u32 %s121, 1
        %s246 = scalar_lea.sflag [#allocation3], %s245
        %s247 = sand.u32 %s121, 1
        %s248 = smul.addr %s247, 64
        %s249 = scalar_lea.vmem [#allocation2], %s248
        %p250 = pneg %p160
        %p251 = pneg %p157
        %s252 = smul.u32 16, %s24
        %p253 = scmp.lt.s32.totalorder %s252, 47
        %s254 = scalar_select %p253, %s252, 47
        %s255 = smul.addr %s254, 8
        %s256 = scalar_lea.vmem %s5, %s255
        %p257 = pneg %p186
        %p258 = pneg %p183
        %s259 = sand.u32 %s173, 1
        %s260 = scalar_lea.sflag [#allocation5], %s259
        %s261 = sand.u32 %s173, 1
        %s262 = scalar_lea.vmem [#allocation4], %s261
        %s263 = smul.u32 16, %s24
        %p264 = scmp.lt.s32.totalorder %s263, 47
        %s265 = scalar_select %p264, %s263, 47
        %s266 = smul.addr %s265, 4
        %s267 = scalar_lea.vmem %s0, %s266
        %s268 = smul.u32 16, %s24
        %s269 = smul.u32 16, %s24
        %s270 = smul.u32 16, %s24
        %p271 = scmp.lt.s32.totalorder %s270, 47
        %s272 = scalar_select %p271, %s270, 47
        %s273 = smul.addr %s272, 8
        %s274 = scalar_lea.vmem %s5, %s273
        %s275 = smul.u32 16, %s24
        %v277 = vld [vmem:[%s267] sm:$0xf]
        %v278 = vld [vmem:[%s267 + $0x4] sm:$0xf]
        %v279 = vld [vmem:[%s267 + $0x8] sm:$0xf]
        %v280 = vld [vmem:[%s267 + $0xc] sm:$0xf]
        %v281 = vld [vmem:[%s267 + $0x10] sm:$0xf]
        %v282 = vld [vmem:[%s267 + $0x14] sm:$0xf]
        %v283 = vld [vmem:[%s267 + $0x18] sm:$0xf]
        %v284 = vld [vmem:[%s267 + $0x1c] sm:$0xf]
        %v285 = vld [vmem:[%s267 + $0x20] sm:$0xf]
        %v286 = vld [vmem:[%s267 + $0x24] sm:$0xf]
        %v287 = vld [vmem:[%s267 + $0x28] sm:$0xf]
        %v288 = vld [vmem:[%s267 + $0x2c] sm:$0xf]
        %v289 = vld [vmem:[%s267 + $0x30] sm:$0xf]
        %v290 = vld [vmem:[%s267 + $0x34] sm:$0xf]
        %v291 = vld [vmem:[%s267 + $0x38] sm:$0xf]
        %v292 = vld [vmem:[%s267 + $0x3c] sm:$0xf]
        %v293 = vld [vmem:[%s1] sm:$0xf]
        %v294 = vld [vmem:[%s1 + $0x4] sm:$0xf]
        %v295 = vld [vmem:[%s1 + $0x8] sm:$0xf]
        %v296 = vld [vmem:[%s1 + $0xc] sm:$0xf]
        %v297 = vld [vmem:[%s1 + $0x10] sm:$0xf]
        %v298 = vld [vmem:[%s1 + $0x14] sm:$0xf]
        %v315 = vunpack.c.l.b16 %v277
        %v316 = vunpack.c.l.b16 %v278
        %v317 = vunpack.c.l.b16 %v279
        %v318 = vunpack.c.l.b16 %v280
        %v319 = vunpack.c.l.b16 %v281
        %v320 = vunpack.c.l.b16 %v282
        %v321 = vunpack.c.l.b16 %v283
        %v322 = vunpack.c.l.b16 %v284
        %v323 = vunpack.c.l.b16 %v285
        %v324 = vunpack.c.l.b16 %v286
        %v325 = vunpack.c.l.b16 %v287
        %v326 = vunpack.c.l.b16 %v288
        %v327 = vunpack.c.l.b16 %v289
        %v328 = vunpack.c.l.b16 %v290
        %v329 = vunpack.c.l.b16 %v291
        %v330 = vunpack.c.l.b16 %v292
        %v331 = vpack.c.b16 %v316, %v315
        %v332 = vpack.c.b16 %v318, %v317
        %v333 = vpack.c.b16 %v320, %v319
        %v334 = vpack.c.b16 %v322, %v321
        %v335 = vpack.c.b16 %v324, %v323
        %v336 = vpack.c.b16 %v326, %v325
        %v337 = vpack.c.b16 %v328, %v327
        %v338 = vpack.c.b16 %v330, %v329
        %v345 = vunpack.c.l.b16 %v293
        %v346 = vunpack.c.l.b16 %v294
        %v347 = vunpack.c.l.b16 %v295
        %v348 = vunpack.c.l.b16 %v296
        %v349 = vunpack.c.l.b16 %v297
        %v350 = vunpack.c.l.b16 %v298
        %v351 = vpack.c.b16 %v346, %v345
        %v352 = vpack.c.b16 %v348, %v347
        %v353 = vpack.c.b16 %v350, %v349
        %vm357 = vcmask 392192
        %v359 = vsel %vm357, %v331, 0
        %v362 = vsel %vm357, %v332, 0
        %v365 = vsel %vm357, %v333, 0
        %v368 = vsel %vm357, %v334, 0
        %v371 = vsel %vm357, %v335, 0
        %v374 = vsel %vm357, %v336, 0
        %v377 = vsel %vm357, %v337, 0
        %v380 = vsel %vm357, %v338, 0
        %382 = vmatprep.subr.bf16.mxu0 0
        %383 = vmatpush1.bf16.msra.mxu0 %v351
        %384 = vmatprep.subr.bf16.mxu0 0
        %385 = vmatpush1.bf16.msra.mxu0 %v352
        %386 = vmatprep.subr.bf16.mxu0 0
        %387 = vmatpush1.bf16.msra.mxu0 %v353
        %388 = vmatprep.subr.bf16.mxu0 0
        %389 = vmatpush1.bf16.msra.mxu0 0
        %390 = vmatprep.subr.bf16.mxu0 0
        %391 = vmatpush1.bf16.msra.mxu0 0
        %392 = vmatprep.subr.bf16.mxu0 0
        %393 = vmatpush1.bf16.msra.mxu0 0
        %394 = vmatprep.subr.bf16.mxu0 0
        %395 = vmatpush1.bf16.msra.mxu0 0
        %396 = vmatprep.subr.bf16.mxu0 0
        %397 = vmatpush1.bf16.msra.mxu0 0
        %398 = vmatprep.subr.bf16.mxu0 0
        %399 = vmatpush1.bf16.msra.mxu0 0
        %400 = vmatprep.subr.bf16.mxu0 0
        %401 = vmatpush1.bf16.msra.mxu0 0
        %402 = vmatprep.subr.bf16.mxu0 0
        %403 = vmatpush1.bf16.msra.mxu0 0
        %404 = vmatprep.subr.bf16.mxu0 0
        %405 = vmatpush1.bf16.msra.mxu0 0
        %406 = vmatprep.subr.bf16.mxu0 0
        %407 = vmatpush1.bf16.msra.mxu0 0
        %408 = vmatprep.subr.bf16.mxu0 0
        %409 = vmatpush1.bf16.msra.mxu0 0
        %410 = vmatprep.subr.bf16.mxu0 0
        %411 = vmatpush1.bf16.msra.mxu0 0
        %412 = vmatprep.subr.bf16.mxu0 0
        %413 = vmatpush1.bf16.msra.mxu0 0
        %414 = vmatprep.mubr.bf16.mxu0 0
        %415 = vmatmul.mubr.bf16.gmra.mrb[0].mxu0 %v359
        %v416 = vpop.f32.mrb[0].mxu0
        %v417 = vadd.f32 0.0, %v416
        %v418 = vpop.f32.mrb[0].mxu0
        %v419 = vpop.f32.mrb[0].mxu0
        %v420 = vadd.f32 0.0, %v419
        %v421 = vpop.f32.mrb[0].mxu0
        %422 = vmatprep.mubr.bf16.mxu0 0
        %423 = vmatmul.mubr.bf16.gmra.mrb[0].mxu0 %v362
        %v424 = vpop.f32.mrb[0].mxu0
        %v425 = vadd.f32 0.0, %v424
        %v426 = vpop.f32.mrb[0].mxu0
        %v427 = vpop.f32.mrb[0].mxu0
        %v428 = vadd.f32 0.0, %v427
        %v429 = vpop.f32.mrb[0].mxu0
        %430 = vmatprep.mubr.bf16.mxu0 0
        %431 = vmatmul.mubr.bf16.gmra.mrb[0].mxu0 %v365
        %v432 = vpop.f32.mrb[0].mxu0
        %v433 = vadd.f32 0.0, %v432
        %v434 = vpop.f32.mrb[0].mxu0
        %v435 = vpop.f32.mrb[0].mxu0
        %v436 = vadd.f32 0.0, %v435
        %v437 = vpop.f32.mrb[0].mxu0
        %438 = vmatprep.mubr.bf16.mxu0 0
        %439 = vmatmul.mubr.bf16.gmra.mrb[0].mxu0 %v368
        %v440 = vpop.f32.mrb[0].mxu0
        %v441 = vadd.f32 0.0, %v440
        %v442 = vpop.f32.mrb[0].mxu0
        %v443 = vpop.f32.mrb[0].mxu0
        %v444 = vadd.f32 0.0, %v443
        %v445 = vpop.f32.mrb[0].mxu0
        %446 = vmatprep.mubr.bf16.mxu0 0
        %447 = vmatmul.mubr.bf16.gmra.mrb[0].mxu0 %v371
        %v448 = vpop.f32.mrb[0].mxu0
        %v449 = vadd.f32 0.0, %v448
        %v450 = vpop.f32.mrb[0].mxu0
        %v451 = vpop.f32.mrb[0].mxu0
        %v452 = vadd.f32 0.0, %v451
        %v453 = vpop.f32.mrb[0].mxu0
        %454 = vmatprep.mubr.bf16.mxu0 0
        %455 = vmatmul.mubr.bf16.gmra.mrb[0].mxu0 %v374
        %v456 = vpop.f32.mrb[0].mxu0
        %v457 = vadd.f32 0.0, %v456
        %v458 = vpop.f32.mrb[0].mxu0
        %v459 = vpop.f32.mrb[0].mxu0
        %v460 = vadd.f32 0.0, %v459
        %v461 = vpop.f32.mrb[0].mxu0
        %462 = vmatprep.mubr.bf16.mxu0 0
        %463 = vmatmul.mubr.bf16.gmra.mrb[0].mxu0 %v377
        %v464 = vpop.f32.mrb[0].mxu0
        %v465 = vadd.f32 0.0, %v464
        %v466 = vpop.f32.mrb[0].mxu0
        %v467 = vpop.f32.mrb[0].mxu0
        %v468 = vadd.f32 0.0, %v467
        %v469 = vpop.f32.mrb[0].mxu0
        %470 = vmatprep.mubr.bf16.mxu0 0
        %471 = vmatmul.mubr.bf16.gmra.mrb[0].mxu0 %v380
        %v472 = vpop.f32.mrb[0].mxu0
        %v473 = vadd.f32 0.0, %v472
        %v474 = vpop.f32.mrb[0].mxu0
        %v475 = vpop.f32.mrb[0].mxu0
        %v476 = vadd.f32 0.0, %v475
        %v477 = vpop.f32.mrb[0].mxu0
        %478 = vdwg.mxu0
        %v479 = vpack.c.bf16 %v420, %v417
        %v480 = vpack.c.bf16 %v428, %v425
        %v481 = vpack.c.bf16 %v436, %v433
        %v482 = vpack.c.bf16 %v444, %v441
        %v483 = vpack.c.bf16 %v452, %v449
        %v484 = vpack.c.bf16 %v460, %v457
        %v485 = vpack.c.bf16 %v468, %v465
        %v486 = vpack.c.bf16 %v476, %v473
        %v495 = vunpack.c.l.b16 %v479
        %v496 = vunpack.c.h.b16 %v479
        %v497 = vunpack.c.l.b16 %v480
        %v498 = vunpack.c.h.b16 %v480
        %v499 = vunpack.c.l.b16 %v481
        %v500 = vunpack.c.h.b16 %v481
        %v501 = vunpack.c.l.b16 %v482
        %v502 = vunpack.c.h.b16 %v482
        %v503 = vunpack.c.l.b16 %v483
        %v504 = vunpack.c.h.b16 %v483
        %v505 = vunpack.c.l.b16 %v484
        %v506 = vunpack.c.h.b16 %v484
        %v507 = vunpack.c.l.b16 %v485
        %v508 = vunpack.c.h.b16 %v485
        %v509 = vunpack.c.l.b16 %v486
        %v510 = vunpack.c.h.b16 %v486
        %v511 = vpack.c.b16 %v495, %v495
        %v512 = vpack.c.b16 %v496, %v496
        %v513 = vpack.c.b16 %v497, %v497
        %v514 = vpack.c.b16 %v498, %v498
        %v515 = vpack.c.b16 %v499, %v499
        %v516 = vpack.c.b16 %v500, %v500
        %v517 = vpack.c.b16 %v501, %v501
        %v518 = vpack.c.b16 %v502, %v502
        %v519 = vpack.c.b16 %v503, %v503
        %v520 = vpack.c.b16 %v504, %v504
        %v521 = vpack.c.b16 %v505, %v505
        %v522 = vpack.c.b16 %v506, %v506
        %v523 = vpack.c.b16 %v507, %v507
        %v524 = vpack.c.b16 %v508, %v508
        %v525 = vpack.c.b16 %v509, %v509
        %v526 = vpack.c.b16 %v510, %v510
        %543 = vst [vmem:[%s249] sm:$0xf] %v511
        %544 = vst [vmem:[%s249 + $0x4] sm:$0xf] %v512
        %545 = vst [vmem:[%s249 + $0x8] sm:$0xf] %v513
        %546 = vst [vmem:[%s249 + $0xc] sm:$0xf] %v514
        %547 = vst [vmem:[%s249 + $0x10] sm:$0xf] %v515
        %548 = vst [vmem:[%s249 + $0x14] sm:$0xf] %v516
        %549 = vst [vmem:[%s249 + $0x18] sm:$0xf] %v517
        %550 = vst [vmem:[%s249 + $0x1c] sm:$0xf] %v518
        %551 = vst [vmem:[%s249 + $0x20] sm:$0xf] %v519
        %552 = vst [vmem:[%s249 + $0x24] sm:$0xf] %v520
        %553 = vst [vmem:[%s249 + $0x28] sm:$0xf] %v521
        %554 = vst [vmem:[%s249 + $0x2c] sm:$0xf] %v522
        %555 = vst [vmem:[%s249 + $0x30] sm:$0xf] %v523
        %556 = vst [vmem:[%s249 + $0x34] sm:$0xf] %v524
        %557 = vst [vmem:[%s249 + $0x38] sm:$0xf] %v525
        %558 = vst [vmem:[%s249 + $0x3c] sm:$0xf] %v526
        %v559 = vld [vmem:[%s2] sm:$0x1]
        %v561 = vlaneseq
        %v562 = vshrl.u32 %v561, 7
        %v563 = vsub.s32 0, %v562
        %v564 = vrot.slane %v559, %v563
        %v566 = vmul.f32 %v417, %v564
        %v567 = vmul.f32 %v420, %v564
        %v568 = vmul.f32 %v425, %v564
        %v569 = vmul.f32 %v428, %v564
        %v570 = vmul.f32 %v433, %v564
        %v571 = vmul.f32 %v436, %v564
        %v572 = vmul.f32 %v441, %v564
        %v573 = vmul.f32 %v444, %v564
        %v574 = vmul.f32 %v449, %v564
        %v575 = vmul.f32 %v452, %v564
        %v576 = vmul.f32 %v457, %v564
        %v577 = vmul.f32 %v460, %v564
        %v578 = vmul.f32 %v465, %v564
        %v579 = vmul.f32 %v468, %v564
        %v580 = vmul.f32 %v473, %v564
        %v581 = vmul.f32 %v476, %v564
        %582 = vadd.xlane.f32.xlu0 %v566
        %v583 = vpop.xlane.xlu0 %582
        %584 = vadd.xlane.f32.xlu0 %v567
        %v585 = vpop.xlane.xlu0 %584
        %586 = vadd.xlane.f32.xlu0 %v568
        %v587 = vpop.xlane.xlu0 %586
        %588 = vadd.xlane.f32.xlu0 %v569
        %v589 = vpop.xlane.xlu0 %588
        %590 = vadd.xlane.f32.xlu0 %v570
        %v591 = vpop.xlane.xlu0 %590
        %592 = vadd.xlane.f32.xlu0 %v571
        %v593 = vpop.xlane.xlu0 %592
        %594 = vadd.xlane.f32.xlu0 %v572
        %v595 = vpop.xlane.xlu0 %594
        %596 = vadd.xlane.f32.xlu0 %v573
        %v597 = vpop.xlane.xlu0 %596
        %598 = vadd.xlane.f32.xlu0 %v574
        %v599 = vpop.xlane.xlu0 %598
        %600 = vadd.xlane.f32.xlu0 %v575
        %v601 = vpop.xlane.xlu0 %600
        %602 = vadd.xlane.f32.xlu0 %v576
        %v603 = vpop.xlane.xlu0 %602
        %604 = vadd.xlane.f32.xlu0 %v577
        %v605 = vpop.xlane.xlu0 %604
        %606 = vadd.xlane.f32.xlu0 %v578
        %v607 = vpop.xlane.xlu0 %606
        %608 = vadd.xlane.f32.xlu0 %v579
        %v609 = vpop.xlane.xlu0 %608
        %610 = vadd.xlane.f32.xlu0 %v580
        %v611 = vpop.xlane.xlu0 %610
        %612 = vadd.xlane.f32.xlu0 %v581
        %v613 = vpop.xlane.xlu0 %612
        %vm614 = vcmask 7168
        %615 = vst.msk [vmem:[%s274] sm:$0xff] %vm614, %v583
        %616 = vst.msk [vmem:[%s274 + $0x8] sm:$0xff] %vm614, %v585
        %617 = vst.msk [vmem:[%s274 + $0x10] sm:$0xff] %vm614, %v587
        %618 = vst.msk [vmem:[%s274 + $0x18] sm:$0xff] %vm614, %v589
        %619 = vst.msk [vmem:[%s274 + $0x20] sm:$0xff] %vm614, %v591
        %620 = vst.msk [vmem:[%s274 + $0x28] sm:$0xff] %vm614, %v593
        %621 = vst.msk [vmem:[%s274 + $0x30] sm:$0xff] %vm614, %v595
        %622 = vst.msk [vmem:[%s274 + $0x38] sm:$0xff] %vm614, %v597
        %623 = vst.msk [vmem:[%s274 + $0x40] sm:$0xff] %vm614, %v599
        %624 = vst.msk [vmem:[%s274 + $0x48] sm:$0xff] %vm614, %v601
        %625 = vst.msk [vmem:[%s274 + $0x50] sm:$0xff] %vm614, %v603
        %626 = vst.msk [vmem:[%s274 + $0x58] sm:$0xff] %vm614, %v605
        %627 = vst.msk [vmem:[%s274 + $0x60] sm:$0xff] %vm614, %v607
        %628 = vst.msk [vmem:[%s274 + $0x68] sm:$0xff] %vm614, %v609
        %629 = vst.msk [vmem:[%s274 + $0x70] sm:$0xff] %vm614, %v611
        %630 = vst.msk [vmem:[%s274 + $0x78] sm:$0xff] %vm614, %v613
        %631 = vxpose.xlu0.b32.start [1/16] %v417, 128
        %632 = vxpose.xlu0.b32.cont [2/16] %v420, 128
        %633 = vxpose.xlu0.b32.cont [3/16] %v425, 128
        %634 = vxpose.xlu0.b32.cont [4/16] %v428, 128
        %635 = vxpose.xlu0.b32.cont [5/16] %v433, 128
        %636 = vxpose.xlu0.b32.cont [6/16] %v436, 128
        %637 = vxpose.xlu0.b32.cont [7/16] %v441, 128
        %638 = vxpose.xlu0.b32.cont [8/16] %v444, 128
        %639 = vxpose.xlu0.b32.cont [9/16] %v449, 128
        %640 = vxpose.xlu0.b32.cont [10/16] %v452, 128
        %641 = vxpose.xlu0.b32.cont [11/16] %v457, 128
        %642 = vxpose.xlu0.b32.cont [12/16] %v460, 128
        %643 = vxpose.xlu0.b32.cont [13/16] %v465, 128
        %644 = vxpose.xlu0.b32.cont [14/16] %v468, 128
        %645 = vxpose.xlu0.b32.cont [15/16] %v473, 128
        %646 = vxpose.xlu0.b32.end [16/16] %v476, 128
        %v647 = vpop.trf.xlu0
        %v648 = vpop.trf.xlu0
        %v649 = vpop.trf.xlu0
        %v650 = vpop.trf.xlu0
        %v651 = vpop.trf.xlu0
        %v652 = vpop.trf.xlu0
        %v653 = vpop.trf.xlu0
        %v654 = vpop.trf.xlu0
        %v655 = vpop.trf.xlu0
        %v656 = vpop.trf.xlu0
        %v657 = vpop.trf.xlu0
        %v658 = vpop.trf.xlu0
        %v659 = vpop.trf.xlu0
        %v660 = vpop.trf.xlu0
        %v661 = vpop.trf.xlu0
        %v662 = vpop.trf.xlu0
        %v663 = vld [vmem:[%s3] sm:$0xff]
        %v664 = vld [vmem:[%s3 + $0x8] sm:$0xff]
        %v665 = vld [vmem:[%s3 + $0x10] sm:$0xff]
        %v666 = vld [vmem:[%s3 + $0x18] sm:$0xff]
        %v667 = vld [vmem:[%s3 + $0x20] sm:$0xff]
        %v668 = vld [vmem:[%s3 + $0x28] sm:$0xff]
        %v669 = vld [vmem:[%s3 + $0x30] sm:$0xff]
        %v670 = vld [vmem:[%s3 + $0x38] sm:$0xff]
        %v671 = vld [vmem:[%s3 + $0x40] sm:$0xff]
        %v672 = vld [vmem:[%s3 + $0x48] sm:$0xff]
        %v673 = vld [vmem:[%s3 + $0x50] sm:$0xff]
        %v674 = vld [vmem:[%s3 + $0x58] sm:$0xff]
        %v675 = vld [vmem:[%s3 + $0x60] sm:$0xff]
        %v676 = vld [vmem:[%s3 + $0x68] sm:$0xff]
        %v677 = vld [vmem:[%s3 + $0x70] sm:$0xff]
        %v678 = vld [vmem:[%s3 + $0x78] sm:$0xff]
        %680 = vset.pattern.permute.xlu0 0
        %681 = vperm.xlu0 %680, %v663
        %v682 = vpop.permute.xlu0 %681
        %685 = vset.pattern.permute.xlu0 0
        %686 = vperm.xlu0 %685, %v664
        %v687 = vpop.permute.xlu0 %686
        %690 = vset.pattern.permute.xlu0 0
        %691 = vperm.xlu0 %690, %v665
        %v692 = vpop.permute.xlu0 %691
        %695 = vset.pattern.permute.xlu0 0
        %696 = vperm.xlu0 %695, %v666
        %v697 = vpop.permute.xlu0 %696
        %700 = vset.pattern.permute.xlu0 0
        %701 = vperm.xlu0 %700, %v667
        %v702 = vpop.permute.xlu0 %701
        %705 = vset.pattern.permute.xlu0 0
        %706 = vperm.xlu0 %705, %v668
        %v707 = vpop.permute.xlu0 %706
        %710 = vset.pattern.permute.xlu0 0
        %711 = vperm.xlu0 %710, %v669
        %v712 = vpop.permute.xlu0 %711
        %715 = vset.pattern.permute.xlu0 0
        %716 = vperm.xlu0 %715, %v670
        %v717 = vpop.permute.xlu0 %716
        %720 = vset.pattern.permute.xlu0 0
        %721 = vperm.xlu0 %720, %v671
        %v722 = vpop.permute.xlu0 %721
        %725 = vset.pattern.permute.xlu0 0
        %726 = vperm.xlu0 %725, %v672
        %v727 = vpop.permute.xlu0 %726
        %730 = vset.pattern.permute.xlu0 0
        %731 = vperm.xlu0 %730, %v673
        %v732 = vpop.permute.xlu0 %731
        %735 = vset.pattern.permute.xlu0 0
        %736 = vperm.xlu0 %735, %v674
        %v737 = vpop.permute.xlu0 %736
        %740 = vset.pattern.permute.xlu0 0
        %741 = vperm.xlu0 %740, %v675
        %v742 = vpop.permute.xlu0 %741
        %745 = vset.pattern.permute.xlu0 0
        %746 = vperm.xlu0 %745, %v676
        %v747 = vpop.permute.xlu0 %746
        %750 = vset.pattern.permute.xlu0 0
        %751 = vperm.xlu0 %750, %v677
        %v752 = vpop.permute.xlu0 %751
        %755 = vset.pattern.permute.xlu0 0
        %756 = vperm.xlu0 %755, %v678
        %v757 = vpop.permute.xlu0 %756
        %v759 = vmul.f32 %v647, %v682
        %v760 = vmul.f32 %v648, %v687
        %v761 = vmul.f32 %v649, %v692
        %v762 = vmul.f32 %v650, %v697
        %v763 = vmul.f32 %v651, %v702
        %v764 = vmul.f32 %v652, %v707
        %v765 = vmul.f32 %v653, %v712
        %v766 = vmul.f32 %v654, %v717
        %v767 = vmul.f32 %v655, %v722
        %v768 = vmul.f32 %v656, %v727
        %v769 = vmul.f32 %v657, %v732
        %v770 = vmul.f32 %v658, %v737
        %v771 = vmul.f32 %v659, %v742
        %v772 = vmul.f32 %v660, %v747
        %v773 = vmul.f32 %v661, %v752
        %v774 = vmul.f32 %v662, %v757
        %v775 = vadd.f32 %v759, %v760
        %v776 = vadd.f32 %v775, %v761
        %v777 = vadd.f32 %v776, %v762
        %v778 = vadd.f32 %v777, %v763
        %v779 = vadd.f32 %v778, %v764
        %v780 = vadd.f32 %v779, %v765
        %v781 = vadd.f32 %v780, %v766
        %v782 = vadd.f32 %v781, %v767
        %v783 = vadd.f32 %v782, %v768
        %v784 = vadd.f32 %v783, %v769
        %v785 = vadd.f32 %v784, %v770
        %v786 = vadd.f32 %v785, %v771
        %v787 = vadd.f32 %v786, %v772
        %v788 = vadd.f32 %v787, %v773
        %v789 = vadd.f32 %v788, %v774
        %v790 = vrot.slane %v789, 4
        %v791 = vadd.f32 %v789, %v790
        %v792 = vrot.slane %v791, 2
        %v793 = vadd.f32 %v791, %v792
        %v794 = vrot.slane %v793, 1
        %v795 = vadd.f32 %v793, %v794
        %796 = vst [vmem:[%s262] sm:$0x1] %v795
        %s797 = sand.u32 %s121, 1
        %s798 = scalar_lea.sflag [#allocation3], %s797
        %s799 = sand.u32 %s121, 1
        %s800 = smul.addr %s799, 64
        %s801 = scalar_lea.vmem [#allocation2], %s800
        %s802 = smul.u32 16, %s24
        %p803 = scmp.lt.s32.totalorder %s802, 47
        %s804 = scalar_select %p803, %s802, 47
        %s805 = smul.addr %s804, 8
        %s806 = scalar_lea.vmem %s5, %s805
        %s807 = sand.u32 %s173, 1
        %s808 = scalar_lea.sflag [#allocation5], %s807
        %s809 = sand.u32 %s173, 1
        %s810 = scalar_lea.vmem [#allocation4], %s809
        // Predicated region
        $region37: #{tpu_custom_call.1} parent=35 // pred_check
          %p811 = pneg %p131
        $region38: #{tpu_custom_call.1} parent=35 // pred_check_branch
          %813 = sbr.rel (%p811) target = $region40
        $region39: #{tpu_custom_call.1} parent=35 // pred_region
          %s814 = smul.u32 16, %s24
          %s816 = ssub.s32 1024, 1024
          %817 = vsyncadd %s798, %s816
          %s818 = smul.addr %s814, 64
          %s819 = scalar_lea.hbm %s4, %s818
          %s820 = sshll.u32 %s801, 4
          %s821 = int_to_ptr.vmem [resolvable:$true] %s820
          %826 = dma.vmem_to_hbm [thread:$0]  %s821, 1024, %s819, %s798, 64, 64, 4
        $region40: #{tpu_custom_call.1} parent=35 // pred_fallthru
          _
        // Predicated region
        $region41: #{tpu_custom_call.1} parent=35 // pred_check
          %p827 = pneg %p157
        $region42: #{tpu_custom_call.1} parent=35 // pred_check_branch
          %829 = sbr.rel (%p827) target = $region44
        $region43: #{tpu_custom_call.1} parent=35 // pred_region
          %s830 = smul.u32 16, %s24
        $region44: #{tpu_custom_call.1} parent=35 // pred_fallthru
          _
        // Predicated region
        $region45: #{tpu_custom_call.1} parent=35 // pred_check
          %p831 = pneg %p183
        $region46: #{tpu_custom_call.1} parent=35 // pred_check_branch
          %833 = sbr.rel (%p831) target = $region48
        $region47: #{tpu_custom_call.1} parent=35 // pred_region
          %s835 = ssub.s32 16, 16
          %836 = vsyncadd %s808, %s835
          %s837 = smul.addr %s24, 16
          %s838 = scalar_lea.hbm %s6, %s837
          %s840 = sshll.u32 %s810, 4
          %s841 = int_to_ptr.vmem [resolvable:$true] %s840
          %843 = dma.vmem_to_hbm [thread:$0]  %s841, 16, %s838, %s808
        $region48: #{tpu_custom_call.1} parent=35 // pred_fallthru
          _
      $region36: #{tpu_custom_call.1} parent=5 // pred_fallthru
        _
      %p844 = scmp.le.s32.totalorder 2, %s19
      // Predicated region
      $region49: #{tpu_custom_call.1} parent=5 // pred_check
        %p845 = pneg %p844
      $region50: #{tpu_custom_call.1} parent=5 // pred_check_branch
        %847 = sbr.rel (%p845) target = $region52
      $region51: #{tpu_custom_call.1} parent=5 // pred_region
        %s848 = ssub.s32 %s19, 2
        // Predicated region
        $region53: #{tpu_custom_call.1} parent=51 // pred_check
          %p849 = pneg %p137
        $region54: #{tpu_custom_call.1} parent=51 // pred_check_branch
          %851 = sbr.rel (%p849) target = $region56
        $region55: #{tpu_custom_call.1} parent=51 // pred_region
          %s852 = sand.u32 %s122, 1
          %s853 = scalar_lea.sflag [#allocation3], %s852
          %s854 = sand.u32 %s122, 1
          %s855 = smul.addr %s854, 64
          %s856 = scalar_lea.vmem [#allocation2], %s855
          %857 = dma.done %s853, 1024
        $region56: #{tpu_custom_call.1} parent=51 // pred_fallthru
          _
        // Predicated region
        $region57: #{tpu_custom_call.1} parent=51 // pred_check
          %p858 = pneg %p163
        $region58: #{tpu_custom_call.1} parent=51 // pred_check_branch
          %860 = sbr.rel (%p858) target = $region60
        $region59: #{tpu_custom_call.1} parent=51 // pred_region
          %s861 = smul.u32 16, %s25
          %p862 = scmp.lt.s32.totalorder %s861, 47
          %s863 = scalar_select %p862, %s861, 47
          %s864 = smul.addr %s863, 8
          %s865 = scalar_lea.vmem %s5, %s864
        $region60: #{tpu_custom_call.1} parent=51 // pred_fallthru
          _
        // Predicated region
        $region61: #{tpu_custom_call.1} parent=51 // pred_check
          %p866 = pneg %p189
        $region62: #{tpu_custom_call.1} parent=51 // pred_check_branch
          %868 = sbr.rel (%p866) target = $region64
        $region63: #{tpu_custom_call.1} parent=51 // pred_region
          %s869 = sand.u32 %s174, 1
          %s870 = scalar_lea.sflag [#allocation5], %s869
          %s871 = sand.u32 %s174, 1
          %s872 = scalar_lea.vmem [#allocation4], %s871
          %873 = dma.done %s870, 16
        $region64: #{tpu_custom_call.1} parent=51 // pred_fallthru
          _
      $region52: #{tpu_custom_call.1} parent=5 // pred_fallthru
        _
    $region6: #{tpu_custom_call.1} parent=1 // loop_footer
      %s23 = sadd.s32 1, %s19
    $region7: #{tpu_custom_call.1} parent=1 // loop_footer_branch
      %18 = sbr.rel target = $region3
    $region8: #{tpu_custom_call.1} parent=1 // loop_exit
      _
    %874 = vsyncpa [#allocation3], 1
    %s875 = scalar_lea.sflag [#allocation3], 1
    %876 = vsyncpa %s875, 1
    %877 = vsyncpa [#allocation5], 1
    %s878 = scalar_lea.sflag [#allocation5], 1
    %879 = vsyncpa %s878, 1

</llo_original>
